<compile_context>
chip_gen: v5e
topology: v5e:2x2
jax: 0.10.0
libtpu: 0.0.40
codegen_flags: <defaults>
</compile_context>

<pallas_src>
import functools

import jax
import jax.numpy as jnp
from jax import lax
from jax.experimental import pallas as pl
from jax.experimental.pallas import tpu as pltpu


def _round_up(x, m):
    return ((x + m - 1) // m) * m


# ----------------------------------------------------------------------------------
# Pallas kernel 1: row-tiled matmul with VMEM-resident W + bias + leaky_relu
# (pointwise 1x1 conv, BN scale folded into W offline)
# ----------------------------------------------------------------------------------
def _pw_matmul_bias_lrelu_kernel(a_ref, w_ref, b_ref, o_ref, *, slope):
    a = a_ref[...].astype(jnp.bfloat16)                    # in-kernel cast (free VPU op)
    y = jnp.dot(a, w_ref[...], preferred_element_type=jnp.float32)
    y = y + b_ref[...]
    o_ref[...] = jnp.maximum(y, slope * y).astype(o_ref.dtype)   # leaky_relu (mul+max)


def pointwise_conv_bn_lrelu(x_nhwc, w_eff, bias, *, slope=0.01):
    """x:[N,H,W,Cin] (f32 or bf16), w_eff:[Cin,Cout] (BN scale pre-folded), bias:[Cout] f32.
    Returns [N,H,W,Cout] f32.  1x1 conv + BN + leaky_relu as one row-tiled MXU matmul with the
    (small) weight matrix held resident in VMEM."""
    N, H, W, Cin = x_nhwc.shape
    Cout = w_eff.shape[1]
    M = N * H * W
    K = Cin                                               # K is never padded: block K == full dim
    N_pad = _round_up(Cout, 128)                          # lane-dense output stores

    # Row tile: >=2 grid steps when possible (megacore / v7x second TC), 16-sublane aligned.
    if M >= 32:
        tm = min(512, _round_up((M + 1) // 2, 16))
    else:
        tm = _round_up(max(M, 1), 16)
    M_pad = _round_up(M, tm)

    a = x_nhwc.reshape(M, K)                              # layout-free reshape, no cast/pad pass
    if M_pad != M:
        a = jnp.pad(a, ((0, M_pad - M), (0, 0)))
    w = w_eff.astype(jnp.bfloat16)
    if N_pad != Cout:
        w = jnp.pad(w, ((0, 0), (0, N_pad - Cout)))
    b = bias.astype(jnp.float32)
    if N_pad != Cout:
        b = jnp.pad(b, (0, N_pad - Cout))
    b = b.reshape(1, N_pad)

    a_item = jnp.dtype(a.dtype).itemsize
    vmem_need = (2 * tm * K * a_item            # A, double-buffered
                 + K * N_pad * 2                # resident W (bf16)
                 + 2 * tm * N_pad * 4           # output, double-buffered (f32)
                 + 2 * N_pad * 4)               # bias
    vmem_limit = int(min(max(2 * vmem_need, 16 * 1024 * 1024), 48 * 1024 * 1024))

    cost = pl.CostEstimate(
        flops=2 * M_pad * K * N_pad,
        transcendentals=0,
        bytes_accessed=M_pad * K * a_item + K * N_pad * 2 + M_pad * N_pad * 4)

    out = pl.pallas_call(
        functools.partial(_pw_matmul_bias_lrelu_kernel, slope=slope),
        out_shape=jax.ShapeDtypeStruct((M_pad, N_pad), jnp.float32),
        grid_spec=pltpu.PrefetchScalarGridSpec(
            num_scalar_prefetch=0,
            grid=(M_pad // tm,),
            in_specs=[
                pl.BlockSpec((tm, K), lambda i: (i, 0)),          # streamed activation rows
                pl.BlockSpec((K, N_pad), lambda i: (0, 0)),       # whole W, revisited -> resident
                pl.BlockSpec((1, N_pad), lambda i: (0, 0)),       # bias, resident
            ],
            out_specs=pl.BlockSpec((tm, N_pad), lambda i: (i, 0)),
        ),
        compiler_params=pltpu.CompilerParams(
            dimension_semantics=("parallel",),
            vmem_limit_bytes=vmem_limit),
        cost_estimate=cost,
    )(a, w, b)
    return out[:M, :Cout].reshape(N, H, W, Cout)


# ----------------------------------------------------------------------------------
# Pallas kernel 2: depthwise (groups = channels) conv, VPU tap accumulation,
# channel-tiled grid, per-tap REF slicing (stride==1 fast path)
# ----------------------------------------------------------------------------------
def _depthwise_kernel(x_ref, w_ref, o_ref, *, kh, kw, stride, dilation, out_h, out_w):
    # x_ref: [1, Hp, Wp, tc] bf16 (spatially padded),  w_ref: [kh*kw, tc] f32
    # o_ref: [1, out_h, out_w, tc] bf16
    tc = o_ref.shape[-1]
    acc = jnp.zeros((1, out_h, out_w, tc), jnp.float32)
    if stride == 1:
        for i in range(kh):
            for j in range(kw):
                win = x_ref[:, pl.ds(i * dilation, out_h), pl.ds(j * dilation, out_w), :]
                tap = w_ref[i * kw + j, :].reshape(1, 1, 1, tc)
                acc = acc + win.astype(jnp.float32) * tap
    else:
        # TODO(synk): stride>1 falls back to value strided slices (materializes per-tap copies).
        x = x_ref[...]
        for i in range(kh):
            for j in range(kw):
                win = x[:, i * dilation:i * dilation + (out_h - 1) * stride + 1:stride,
                        j * dilation:j * dilation + (out_w - 1) * stride + 1:stride, :]
                tap = w_ref[i * kw + j, :].reshape(1, 1, 1, tc)
                acc = acc + win.astype(jnp.float32) * tap
    o_ref[...] = acc.astype(o_ref.dtype)


def depthwise_conv(x_nhwc, w_dw, *, stride, padding, dilation):
    """Depthwise conv.  x:[N,H,W,C], w_dw:[kh,kw,C].  Returns [N,Ho,Wo,C_pad] bf16; the channel
    axis is zero-padded to a multiple of 128 only when C >= 128 (the downstream pointwise matmul
    pads its K rows identically, so the padding flows through for free)."""
    N, H, W, C = x_nhwc.shape
    kh, kw = int(w_dw.shape[0]), int(w_dw.shape[1])
    Ho = (H + 2 * padding - dilation * (kh - 1) - 1) // stride + 1
    Wo = (W + 2 * padding - dilation * (kw - 1) - 1) // stride + 1

    if C >= 128:
        C_pad, tc = _round_up(C, 128), 128
    else:
        C_pad, tc = C, C                                  # full-dim lane block (no pad for tiny C)

    x = jnp.pad(x_nhwc.astype(jnp.bfloat16),              # bf16 halves the padded-copy traffic
                ((0, 0), (padding, padding), (padding, padding), (0, C_pad - C)))
    w = w_dw.astype(jnp.float32)
    if C_pad != C:
        w = jnp.pad(w, ((0, 0), (0, 0), (0, C_pad - C)))
    w = w.reshape(kh * kw, C_pad)
    Hp, Wp = x.shape[1], x.shape[2]

    # TODO(synk): very large feature maps would additionally need output-row tiling with a halo;
    # channel tiling alone bounds VMEM per step at Hp*Wp*tc*2 bytes.
    kernel = functools.partial(_depthwise_kernel, kh=kh, kw=kw, stride=stride,
                               dilation=dilation, out_h=Ho, out_w=Wo)
    return pl.pallas_call(
        kernel,
        out_shape=jax.ShapeDtypeStruct((N, Ho, Wo, C_pad), jnp.bfloat16),
        grid_spec=pltpu.PrefetchScalarGridSpec(
            num_scalar_prefetch=0,
            grid=(N, C_pad // tc),
            in_specs=[
                pl.BlockSpec((1, Hp, Wp, tc), lambda n, c: (n, 0, 0, c)),
                pl.BlockSpec((kh * kw, tc), lambda n, c: (0, c)),
            ],
            out_specs=pl.BlockSpec((1, Ho, Wo, tc), lambda n, c: (n, 0, 0, c)),
        ),
        compiler_params=pltpu.CompilerParams(
            dimension_semantics=("parallel", "parallel")),
    )(x, w)


# ----------------------------------------------------------------------------------
# Parameters (deterministic synthetic init, PyTorch kaiming_normal_(a=1) statistics)
# ----------------------------------------------------------------------------------
def init_separable_params(key, in_channels, out_channels, kernel_size=1, stride=1,
                          padding=0, dilation=1):
    k_dw, k_pw = jax.random.split(key)
    # kaiming_normal_(a=1): std = sqrt(2 / ((1 + a^2) * fan_in)) = sqrt(1 / fan_in)
    fan_dw = kernel_size * kernel_size                     # groups == in_channels -> cin/g == 1
    w_dw = jax.random.normal(k_dw, (kernel_size, kernel_size, in_channels),
                             jnp.float32) * (1.0 / fan_dw) ** 0.5
    w_pw = jax.random.normal(k_pw, (in_channels, out_channels),
                             jnp.float32) * (1.0 / in_channels) ** 0.5

    # BatchNorm folded with inference running stats (mean=0, var=1, gamma=1, beta=0).
    # TODO(synk): training-mode batch statistics are not modeled (inference-BN semantics).
    eps = 1e-5
    bn_scale = jnp.ones((out_channels,), jnp.float32) / jnp.sqrt(1.0 + eps)
    bn_bias = jnp.zeros((out_channels,), jnp.float32)

    w_pw_eff = w_pw * bn_scale[None, :]                    # fold BN scale into pointwise weights
    p = dict(ks=kernel_size, stride=stride, padding=padding, dilation=dilation,
             w_dw=w_dw, w_pw=w_pw, w_pw_eff=w_pw_eff, bias=bn_bias, bn_scale=bn_scale)
    if kernel_size == 1 and stride == 1 and padding == 0:
        # 1x1 depthwise == per-channel scale: fold it into the pointwise matrix offline.
        p["w_fused"] = w_pw_eff * w_dw.reshape(in_channels, 1)
    return p


# ----------------------------------------------------------------------------------
# Forward pass (NCHW in/out like the PyTorch module; NHWC internally)
# ----------------------------------------------------------------------------------
def separable_conv_bn_relu_fwd(x_nchw, p):
    # TODO(synk): callers that already hold NHWC activations can skip both transposes.
    x = jnp.transpose(x_nchw, (0, 2, 3, 1)).astype(jnp.float32)      # NHWC
    ks, stride, padding, dilation = p["ks"], p["stride"], p["padding"], p["dilation"]

    if ks == 1 and stride == 1 and padding == 0:
        # Whole module == ONE Pallas matmul (depthwise + pointwise + BN + leaky_relu fused).
        y = pointwise_conv_bn_lrelu(x, p["w_fused"], p["bias"])
    else:
        dw = depthwise_conv(x, p["w_dw"], stride=stride, padding=padding, dilation=dilation)
        c_pad = dw.shape[-1]
        w_eff = p["w_pw_eff"]
        if c_pad != w_eff.shape[0]:
            w_eff = jnp.pad(w_eff, ((0, c_pad - w_eff.shape[0]), (0, 0)))
        y = pointwise_conv_bn_lrelu(dw, w_eff, p["bias"])
    return jnp.transpose(y, (0, 3, 1, 2))


# ----------------------------------------------------------------------------------
# Pure-JAX reference (for correctness check only)
# ----------------------------------------------------------------------------------
def reference_fwd(x_nchw, p):
    cin = p["w_dw"].shape[-1]
    s, pad, d = p["stride"], p["padding"], p["dilation"]
    w_dw = jnp.transpose(p["w_dw"], (2, 0, 1))[:, None, :, :]        # (Cin,1,kh,kw) OIHW
    y = lax.conv_general_dilated(
        x_nchw.astype(jnp.float32), w_dw, window_strides=(s, s),
        padding=[(pad, pad), (pad, pad)], rhs_dilation=(d, d),
        feature_group_count=cin, dimension_numbers=("NCHW", "OIHW", "NCHW"))
    w_pw = jnp.transpose(p["w_pw"], (1, 0))[:, :, None, None]        # (Cout,Cin,1,1)
    y = lax.conv_general_dilated(y, w_pw, (1, 1), "VALID",
                                 dimension_numbers=("NCHW", "OIHW", "NCHW"))
    y = y * p["bn_scale"][None, :, None, None] + p["bias"][None, :, None, None]
    return jnp.where(y >= 0.0, y, 0.01 * y)


# ----------------------------------------------------------------------------------
if __name__ == "__main__":
    key = jax.random.PRNGKey(0)
    k_p1, k_p2, k_x = jax.random.split(key, 3)

    N, Cin, H, W = 2, 4, 16, 16
    Cout = 32
    x = jax.random.normal(k_x, (N, Cin, H, W), jnp.float32)

    # 1) Module defaults (kernel_size=1, stride=1, padding=0): fully fused single-matmul path.
    p1 = init_separable_params(k_p1, Cin, Cout)
    out1 = jax.jit(lambda t: separable_conv_bn_relu_fwd(t, p1))(x)
    jax.block_until_ready(out1)
    assert out1.shape == (N, Cout, H, W), out1.shape
    assert bool(jnp.all(jnp.isfinite(out1)))
    ref1 = reference_fwd(x, p1)
    err1 = float(jnp.max(jnp.abs(out1 - ref1)) / (jnp.max(jnp.abs(ref1)) + 1e-6))
    assert err1 < 5e-2, f"fused path mismatch: rel max err {err1}"

    # 2) General separable config (kernel_size=3, padding=1): depthwise kernel + pointwise kernel.
    p2 = init_separable_params(k_p2, Cin, Cout, kernel_size=3, stride=1, padding=1)
    out2 = jax.jit(lambda t: separable_conv_bn_relu_fwd(t, p2))(x)
    jax.block_until_ready(out2)
    assert out2.shape == (N, Cout, H, W), out2.shape
    assert bool(jnp.all(jnp.isfinite(out2)))
    ref2 = reference_fwd(x, p2)
    err2 = float(jnp.max(jnp.abs(out2 - ref2)) / (jnp.max(jnp.abs(ref2)) + 1e-6))
    assert err2 < 5e-2, f"general path mismatch: rel max err {err2}"

    print("KERNEL_OK")
</pallas_src>

<mosaic_0001>
module attributes {stable_mosaic.version = 11 : i64} {
  func.func @_pw_matmul_bias_lrelu_kernel(%arg0: i32, %arg1: memref<256x4xf32, #tpu.memory_space<vmem>>, %arg2: memref<4x128xbf16, #tpu.memory_space<vmem>>, %arg3: memref<1x128xf32, #tpu.memory_space<vmem>>, %arg4: memref<256x128xf32, #tpu.memory_space<vmem>>) attributes {dimension_semantics = [#tpu.dimension_semantics<parallel>], iteration_bounds = array<i64: 2>, scalar_prefetch = 0 : i64, scratch_operands = 0 : i64, tpu.core_type = #tpu.core_type<tc>, window_params = [{transform_indices = @transform_0, window_bounds = array<i64: 256, 4>}, {pipeline_mode = #tpu.pipeline_mode<synchronous>, transform_indices = @transform_1, window_bounds = array<i64: 4, 128>}, {pipeline_mode = #tpu.pipeline_mode<synchronous>, transform_indices = @transform_2, window_bounds = array<i64: 1, 128>}, {transform_indices = @transform_3, window_bounds = array<i64: 256, 128>}]} {
    %c0 = arith.constant 0 : index
    %c0_0 = arith.constant 0 : index
    %0 = vector.load %arg1[%c0, %c0_0] : memref<256x4xf32, #tpu.memory_space<vmem>>, vector<256x4xf32>
    %1 = arith.truncf %0 : vector<256x4xf32> to vector<256x4xbf16>
    %c0_1 = arith.constant 0 : index
    %c0_2 = arith.constant 0 : index
    %2 = vector.load %arg2[%c0_1, %c0_2] : memref<4x128xbf16, #tpu.memory_space<vmem>>, vector<4x128xbf16>
    %cst = arith.constant dense<0.000000e+00> : vector<256x128xf32>
    %3 = tpu.matmul %1, %2, %cst {dimension_numbers = #tpu.dot_dimension_numbers<[1], [0], [0], [1], [0, 0, 1, 1], [], []>} : vector<256x4xbf16>, vector<4x128xbf16>, vector<256x128xf32> -> vector<256x128xf32>
    %c0_3 = arith.constant 0 : index
    %c0_4 = arith.constant 0 : index
    %4 = vector.load %arg3[%c0_3, %c0_4] : memref<1x128xf32, #tpu.memory_space<vmem>>, vector<1x128xf32>
    %5 = vector.broadcast %4 : vector<1x128xf32> to vector<256x128xf32>
    %6 = arith.addf %3, %5 : vector<256x128xf32>
    %cst_5 = arith.constant 0.00999999977 : f32
    %7 = vector.broadcast %cst_5 : f32 to vector<256x128xf32>
    %8 = arith.mulf %7, %6 : vector<256x128xf32>
    %9 = arith.maximumf %6, %8 : vector<256x128xf32>
    %c0_6 = arith.constant 0 : index
    %c0_7 = arith.constant 0 : index
    %10 = vector.load %arg4[%c0_6, %c0_7] : memref<256x128xf32, #tpu.memory_space<vmem>>, vector<256x128xf32>
    tpu.vector_store %arg4[%c0_6, %c0_7], %9 {strides = array<i32>} : memref<256x128xf32, #tpu.memory_space<vmem>>, vector<256x128xf32>,
    return
  }
  func.func @transform_0(%arg0: i32) -> (i32, i32) {
    %c0_i32 = arith.constant 0 : i32
    %c0_i32_0 = arith.constant 0 : i32
    return %arg0, %c0_i32 : i32, i32
  }
  func.func @transform_1(%arg0: i32) -> (i32, i32) {
    %c0_i32 = arith.constant 0 : i32
    %c0_i32_0 = arith.constant 0 : i32
    %c0_i32_1 = arith.constant 0 : i32
    return %c0_i32, %c0_i32_0 : i32, i32
  }
  func.func @transform_2(%arg0: i32) -> (i32, i32) {
    %c0_i32 = arith.constant 0 : i32
    %c0_i32_0 = arith.constant 0 : i32
    %c0_i32_1 = arith.constant 0 : i32
    return %c0_i32, %c0_i32_0 : i32, i32
  }
  func.func @transform_3(%arg0: i32) -> (i32, i32) {
    %c0_i32 = arith.constant 0 : i32
    %c0_i32_0 = arith.constant 0 : i32
    return %arg0, %c0_i32 : i32, i32
  }
}

</mosaic_0001>

<llo_original>
// kernel: _lambda_.1
$region0: #{_lambda_.1}
  #allocation0 [shape = 'u32[]', space=smem, size = 0x4, offset = 0x4, fixed_abs, tag = 'smem constant byte address 0x4 - core index']
  #allocation1 [shape = 'u32[72,128]{1,0:T(1,128)}', space=vmem, size = 0x9000, scoped, tag = 'internal scratch']
  %s0 = inlined_call_operand.vmem [shape: f32[512,4], index: 0, kind: input, shape index: {}]
  %s1 = inlined_call_operand.vmem [shape: bf16[4,128], index: 1, kind: input, shape index: {}]
  %s2 = inlined_call_operand.vmem [shape: f32[1,128], index: 2, kind: input, shape index: {}]
  %s3 = inlined_call_operand.hbm [shape: f32[512,128], index: 3, kind: output, shape index: {}]
  %s4 = sld [smem:[#allocation0]]
  $region45: #{_lambda_.1} parent=0
    _
  %s6 = ssub.s32 1, %s4
  %s7 = scalar_select 0, %s6, %s4
  $region1: #{_lambda_.1} parent=0
    #allocation2 [shape = 'u8[262144]{0}', space=vmem, size = 0x40000, scoped, tag = 'output window, operand 0']
    #allocation3 [shape = 's32[2]{0}', space=sflag, size = 0x8, scoped, tag = 'scoped memory for _lambda_.1']
    %8 = vsyncpa [#allocation3], 0
    %s9 = scalar_lea.sflag [#allocation3], 1
    %10 = vsyncpa %s9, 0
    loop: start=0, step=1, limit=4
    $region2: #{_lambda_.1} parent=1 // loop_pre_header
      _
    $region3: #{_lambda_.1} parent=1 // loop_header
      %s12 = sphi 0, %s16
      %p13 = scmp.ge.s32.totalorder %s12, 4
      %s22 = sphi 0, %s24
      %s25 = sphi 0, %s22
      %s26 = sphi 0, %s25
      %s42 = sphi 0, %s26
      %s46 = sphi 0, %s46
      %s48 = sphi 0, %s46
      %s49 = sphi 0, %s48
      %s63 = sphi 0, %s49
      %s67 = sphi 0, %s67
      %s69 = sphi 0, %s67
      %s70 = sphi 0, %s69
      %s84 = sphi 0, %s70
      %s90 = sphi 0, %s92
      %s93 = sphi 0, %s90
      %s94 = sphi 0, %s93
      %s110 = sphi 0, %s94
    $region4: #{_lambda_.1} parent=1 // loop_header_branch
      %15 = sbr.rel (%p13) target = $region8
    $region5: #{_lambda_.1} parent=1 // loop_body
      %s17 = ssub.s32 %s12, 1
      %s18 = ssub.s32 %s12, 2
      %s19 = sadd.s32 %s12, 1
      %s20 = ssub.s32 %s12, %s19
      %p21 = scmp.eq.s32.totalorder %s20, 0
      %s23 = sadd.s32 %s22, 1
      %s24 = scalar_select %p21, %s22, %s23
      %p27 = pneg %p21
      %p28 = scmp.eq.s32.totalorder %s12, 1
      %p29 = por %p27, %p28
      %p30 = scmp.ne.s32.totalorder %s22, %s25
      %p31 = scmp.eq.s32.totalorder %s12, 0
      %p32 = por %p30, %p31
      %p33 = scmp.ne.s32.totalorder %s22, %s25
      %p34 = scmp.eq.s32.totalorder %s17, 1
      %p35 = por %p33, %p34
      %p36 = scmp.ne.s32.totalorder %s25, %s26
      %p37 = scmp.eq.s32.totalorder %s17, 0
      %p38 = por %p36, %p37
      %p39 = scmp.ne.s32.totalorder %s25, %s26
      %p40 = scmp.eq.s32.totalorder %s18, 1
      %p41 = por %p39, %p40
      %p43 = scmp.ne.s32.totalorder %s26, %s42
      %p44 = scmp.eq.s32.totalorder %s18, 0
      %p45 = por %p43, %p44
      %s47 = sadd.s32 %s46, 1
      %p50 = scmp.eq.s32.totalorder %s12, 1
      %p51 = scmp.ne.s32.totalorder %s46, %s48
      %p52 = scmp.eq.s32.totalorder %s12, 0
      %p53 = por %p51, %p52
      %p54 = scmp.ne.s32.totalorder %s46, %s48
      %p55 = scmp.eq.s32.totalorder %s17, 1
      %p56 = por %p54, %p55
      %p57 = scmp.ne.s32.totalorder %s48, %s49
      %p58 = scmp.eq.s32.totalorder %s17, 0
      %p59 = por %p57, %p58
      %p60 = scmp.ne.s32.totalorder %s48, %s49
      %p61 = scmp.eq.s32.totalorder %s18, 1
      %p62 = por %p60, %p61
      %p64 = scmp.ne.s32.totalorder %s49, %s63
      %p65 = scmp.eq.s32.totalorder %s18, 0
      %p66 = por %p64, %p65
      %s68 = sadd.s32 %s67, 1
      %p71 = scmp.eq.s32.totalorder %s12, 1
      %p72 = scmp.ne.s32.totalorder %s67, %s69
      %p73 = scmp.eq.s32.totalorder %s12, 0
      %p74 = por %p72, %p73
      %p75 = scmp.ne.s32.totalorder %s67, %s69
      %p76 = scmp.eq.s32.totalorder %s17, 1
      %p77 = por %p75, %p76
      %p78 = scmp.ne.s32.totalorder %s69, %s70
      %p79 = scmp.eq.s32.totalorder %s17, 0
      %p80 = por %p78, %p79
      %p81 = scmp.ne.s32.totalorder %s69, %s70
      %p82 = scmp.eq.s32.totalorder %s18, 1
      %p83 = por %p81, %p82
      %p85 = scmp.ne.s32.totalorder %s70, %s84
      %p86 = scmp.eq.s32.totalorder %s18, 0
      %p87 = por %p85, %p86
      %s88 = ssub.s32 %s12, %s19
      %p89 = scmp.eq.s32.totalorder %s88, 0
      %s91 = sadd.s32 %s90, 1
      %s92 = scalar_select %p89, %s90, %s91
      %p95 = pneg %p89
      %p96 = scmp.eq.s32.totalorder %s12, 1
      %p97 = por %p95, %p96
      %p98 = scmp.ne.s32.totalorder %s90, %s93
      %p99 = scmp.eq.s32.totalorder %s12, 0
      %p100 = por %p98, %p99
      %p101 = scmp.ne.s32.totalorder %s90, %s93
      %p102 = scmp.eq.s32.totalorder %s17, 1
      %p103 = por %p101, %p102
      %p104 = scmp.ne.s32.totalorder %s93, %s94
      %p105 = scmp.eq.s32.totalorder %s17, 0
      %p106 = por %p104, %p105
      %p107 = scmp.ne.s32.totalorder %s93, %s94
      %p108 = scmp.eq.s32.totalorder %s18, 1
      %p109 = por %p107, %p108
      %p111 = scmp.ne.s32.totalorder %s94, %s110
      %p112 = scmp.eq.s32.totalorder %s18, 0
      %p113 = por %p111, %p112
      %p114 = scmp.le.s32.totalorder 1, %s12
      %p115 = scmp.lt.s32.totalorder %s12, 3
      %p116 = pnand %p114, %p115
      %p117 = pneg %p116
      // Predicated region
      $region9: #{_lambda_.1} parent=5 // pred_check
        _
      $region10: #{_lambda_.1} parent=5 // pred_check_branch
        %119 = sbr.rel (%p116) target = $region12
      $region11: #{_lambda_.1} parent=5 // pred_region
        %s120 = ssub.s32 %s12, 1
        // Predicated region
        $region13: #{_lambda_.1} parent=11 // pred_check
          %p121 = pneg %p59
        $region14: #{_lambda_.1} parent=11 // pred_check_branch
          %123 = sbr.rel (%p121) target = $region16
        $region15: #{_lambda_.1} parent=11 // pred_region
          _
        $region16: #{_lambda_.1} parent=11 // pred_fallthru
          _
        // Predicated region
        $region17: #{_lambda_.1} parent=11 // pred_check
          %p124 = pneg %p80
        $region18: #{_lambda_.1} parent=11 // pred_check_branch
          %126 = sbr.rel (%p124) target = $region20
        $region19: #{_lambda_.1} parent=11 // pred_region
          _
        $region20: #{_lambda_.1} parent=11 // pred_fallthru
          _
      $region12: #{_lambda_.1} parent=5 // pred_fallthru
        _
      %p127 = scmp.lt.s32.totalorder %s12, 2
      // Predicated region
      $region21: #{_lambda_.1} parent=5 // pred_check
        %p128 = pneg %p127
      $region22: #{_lambda_.1} parent=5 // pred_check_branch
        %130 = sbr.rel (%p128) target = $region24
      $region23: #{_lambda_.1} parent=5 // pred_region
        // Predicated region
        $region25: #{_lambda_.1} parent=23 // pred_check
          %p131 = pneg %p32
        $region26: #{_lambda_.1} parent=23 // pred_check_branch
          %133 = sbr.rel (%p131) target = $region28
        $region27: #{_lambda_.1} parent=23 // pred_region
          %s134 = smul.u32 32, %s12
          %p135 = scmp.lt.s32.totalorder %s134, 63
          %s136 = scalar_select %p135, %s134, 63
          %s137 = smul.addr %s136, 8
          %s138 = scalar_lea.vmem %s0, %s137
          %s139 = smul.u32 32, %s12
        $region28: #{_lambda_.1} parent=23 // pred_fallthru
          _
      $region24: #{_lambda_.1} parent=5 // pred_fallthru
        _
      %p140 = scmp.le.s32.totalorder 1, %s12
      %p141 = scmp.lt.s32.totalorder %s12, 3
      %p142 = pnand %p140, %p141
      %p143 = pneg %p142
      // Predicated region
      $region29: #{_lambda_.1} parent=5 // pred_check
        _
      $region30: #{_lambda_.1} parent=5 // pred_check_branch
        %145 = sbr.rel (%p142) target = $region32
      $region31: #{_lambda_.1} parent=5 // pred_region
        %s146 = ssub.s32 %s12, 1
        %s147 = smul.u32 32, %s17
        %p148 = scmp.lt.s32.totalorder %s147, 63
        %s149 = scalar_select %p148, %s147, 63
        %s150 = smul.addr %s149, 8
        %s151 = scalar_lea.vmem %s0, %s150
        %p152 = pneg %p38
        %p153 = pneg %p35
        %p154 = pneg %p59
        %p155 = pneg %p56
        %p156 = pneg %p80
        %p157 = pneg %p77
        %p158 = pneg %p106
        %p159 = pneg %p103
        %s160 = sand.u32 %s93, 1
        %s161 = scalar_lea.sflag [#allocation3], %s160
        %s162 = sand.u32 %s93, 1
        %s163 = smul.addr %s162, 256
        %s164 = scalar_lea.vmem [#allocation2], %s163
        %s165 = smul.u32 32, %s17
        %p166 = scmp.lt.s32.totalorder %s165, 63
        %s167 = scalar_select %p166, %s165, 63
        %s168 = smul.addr %s167, 8
        %s169 = scalar_lea.vmem %s0, %s168
        %s170 = smul.u32 32, %s17
        %s171 = smul.u32 32, %s17
        %v173 = vld [vmem:[%s169] sm:$0xff]
        %v174 = vld [vmem:[%s169 + $0x8] sm:$0xff]
        %v175 = vld [vmem:[%s169 + $0x10] sm:$0xff]
        %v176 = vld [vmem:[%s169 + $0x18] sm:$0xff]
        %v177 = vld [vmem:[%s169 + $0x20] sm:$0xff]
        %v178 = vld [vmem:[%s169 + $0x28] sm:$0xff]
        %v179 = vld [vmem:[%s169 + $0x30] sm:$0xff]
        %v180 = vld [vmem:[%s169 + $0x38] sm:$0xff]
        %v181 = vld [vmem:[%s169 + $0x40] sm:$0xff]
        %v182 = vld [vmem:[%s169 + $0x48] sm:$0xff]
        %v183 = vld [vmem:[%s169 + $0x50] sm:$0xff]
        %v184 = vld [vmem:[%s169 + $0x58] sm:$0xff]
        %v185 = vld [vmem:[%s169 + $0x60] sm:$0xff]
        %v186 = vld [vmem:[%s169 + $0x68] sm:$0xff]
        %v187 = vld [vmem:[%s169 + $0x70] sm:$0xff]
        %v188 = vld [vmem:[%s169 + $0x78] sm:$0xff]
        %v189 = vld [vmem:[%s169 + $0x80] sm:$0xff]
        %v190 = vld [vmem:[%s169 + $0x88] sm:$0xff]
        %v191 = vld [vmem:[%s169 + $0x90] sm:$0xff]
        %v192 = vld [vmem:[%s169 + $0x98] sm:$0xff]
        %v193 = vld [vmem:[%s169 + $0xa0] sm:$0xff]
        %v194 = vld [vmem:[%s169 + $0xa8] sm:$0xff]
        %v195 = vld [vmem:[%s169 + $0xb0] sm:$0xff]
        %v196 = vld [vmem:[%s169 + $0xb8] sm:$0xff]
        %v197 = vld [vmem:[%s169 + $0xc0] sm:$0xff]
        %v198 = vld [vmem:[%s169 + $0xc8] sm:$0xff]
        %v199 = vld [vmem:[%s169 + $0xd0] sm:$0xff]
        %v200 = vld [vmem:[%s169 + $0xd8] sm:$0xff]
        %v201 = vld [vmem:[%s169 + $0xe0] sm:$0xff]
        %v202 = vld [vmem:[%s169 + $0xe8] sm:$0xff]
        %v203 = vld [vmem:[%s169 + $0xf0] sm:$0xff]
        %v204 = vld [vmem:[%s169 + $0xf8] sm:$0xff]
        %v205 = vpack.c.bf16 %v174, %v173
        %v206 = vpack.c.bf16 %v176, %v175
        %v207 = vpack.c.bf16 %v178, %v177
        %v208 = vpack.c.bf16 %v180, %v179
        %v209 = vpack.c.bf16 %v182, %v181
        %v210 = vpack.c.bf16 %v184, %v183
        %v211 = vpack.c.bf16 %v186, %v185
        %v212 = vpack.c.bf16 %v188, %v187
        %v213 = vpack.c.bf16 %v190, %v189
        %v214 = vpack.c.bf16 %v192, %v191
        %v215 = vpack.c.bf16 %v194, %v193
        %v216 = vpack.c.bf16 %v196, %v195
        %v217 = vpack.c.bf16 %v198, %v197
        %v218 = vpack.c.bf16 %v200, %v199
        %v219 = vpack.c.bf16 %v202, %v201
        %v220 = vpack.c.bf16 %v204, %v203
        %v221 = vld [vmem:[%s1] sm:$0x3]
        %v222 = vld [vmem:[%s2] sm:$0x1]
        %v224 = vperm.slane %v222, 0
        %vm226 = vcmask 31744
        %v228 = vsel %vm226, %v205, 0
        %v231 = vsel %vm226, %v206, 0
        %v234 = vsel %vm226, %v207, 0
        %v237 = vsel %vm226, %v208, 0
        %v240 = vsel %vm226, %v209, 0
        %v243 = vsel %vm226, %v210, 0
        %v246 = vsel %vm226, %v211, 0
        %v249 = vsel %vm226, %v212, 0
        %v252 = vsel %vm226, %v213, 0
        %v255 = vsel %vm226, %v214, 0
        %v258 = vsel %vm226, %v215, 0
        %v261 = vsel %vm226, %v216, 0
        %v264 = vsel %vm226, %v217, 0
        %v267 = vsel %vm226, %v218, 0
        %v270 = vsel %vm226, %v219, 0
        %v273 = vsel %vm226, %v220, 0
        %vm275 = vcmask 1041408
        %v277 = vsel %vm275, %v221, 0
        %279 = vmatpush.bf16.msra.mxu0 0
        %280 = vmatpush.bf16.msra.mxu0 0
        %281 = vmatpush.bf16.msra.mxu0 0
        %282 = vmatpush.bf16.msra.mxu0 0
        %283 = vmatpush.bf16.msra.mxu0 0
        %284 = vmatpush.bf16.msra.mxu0 0
        %285 = vmatpush.bf16.msra.mxu0 0
        %286 = vmatpush.bf16.msra.mxu0 %v277
        %287 = vmatmul.bf16.gmra.mxu0 %v228
        %v288 = vpop.f32.mrf.mxu0
        %v289 = vadd.f32 %v224, %v288
        %v290 = vpop.f32.mrf.mxu0
        %v291 = vadd.f32 %v224, %v290
        %292 = vmatmul.bf16.gmra.mxu0 %v231
        %v293 = vpop.f32.mrf.mxu0
        %v294 = vadd.f32 %v224, %v293
        %v295 = vpop.f32.mrf.mxu0
        %v296 = vadd.f32 %v224, %v295
        %297 = vmatmul.bf16.gmra.mxu0 %v234
        %v298 = vpop.f32.mrf.mxu0
        %v299 = vadd.f32 %v224, %v298
        %v300 = vpop.f32.mrf.mxu0
        %v301 = vadd.f32 %v224, %v300
        %302 = vmatmul.bf16.gmra.mxu0 %v237
        %v303 = vpop.f32.mrf.mxu0
        %v304 = vadd.f32 %v224, %v303
        %v305 = vpop.f32.mrf.mxu0
        %v306 = vadd.f32 %v224, %v305
        %307 = vmatmul.bf16.gmra.mxu0 %v240
        %v308 = vpop.f32.mrf.mxu0
        %v309 = vadd.f32 %v224, %v308
        %v310 = vpop.f32.mrf.mxu0
        %v311 = vadd.f32 %v224, %v310
        %312 = vmatmul.bf16.gmra.mxu0 %v243
        %v313 = vpop.f32.mrf.mxu0
        %v314 = vadd.f32 %v224, %v313
        %v315 = vpop.f32.mrf.mxu0
        %v316 = vadd.f32 %v224, %v315
        %317 = vmatmul.bf16.gmra.mxu0 %v246
        %v318 = vpop.f32.mrf.mxu0
        %v319 = vadd.f32 %v224, %v318
        %v320 = vpop.f32.mrf.mxu0
        %v321 = vadd.f32 %v224, %v320
        %322 = vmatmul.bf16.gmra.mxu0 %v249
        %v323 = vpop.f32.mrf.mxu0
        %v324 = vadd.f32 %v224, %v323
        %v325 = vpop.f32.mrf.mxu0
        %v326 = vadd.f32 %v224, %v325
        %327 = vmatmul.bf16.gmra.mxu0 %v252
        %v328 = vpop.f32.mrf.mxu0
        %v329 = vadd.f32 %v224, %v328
        %v330 = vpop.f32.mrf.mxu0
        %v331 = vadd.f32 %v224, %v330
        %332 = vmatmul.bf16.gmra.mxu0 %v255
        %v333 = vpop.f32.mrf.mxu0
        %v334 = vadd.f32 %v224, %v333
        %v335 = vpop.f32.mrf.mxu0
        %v336 = vadd.f32 %v224, %v335
        %337 = vmatmul.bf16.gmra.mxu0 %v258
        %v338 = vpop.f32.mrf.mxu0
        %v339 = vadd.f32 %v224, %v338
        %v340 = vpop.f32.mrf.mxu0
        %v341 = vadd.f32 %v224, %v340
        %342 = vmatmul.bf16.gmra.mxu0 %v261
        %v343 = vpop.f32.mrf.mxu0
        %v344 = vadd.f32 %v224, %v343
        %v345 = vpop.f32.mrf.mxu0
        %v346 = vadd.f32 %v224, %v345
        %347 = vmatmul.bf16.gmra.mxu0 %v264
        %v348 = vpop.f32.mrf.mxu0
        %v349 = vadd.f32 %v224, %v348
        %v350 = vpop.f32.mrf.mxu0
        %v351 = vadd.f32 %v224, %v350
        %352 = vmatmul.bf16.gmra.mxu0 %v267
        %v353 = vpop.f32.mrf.mxu0
        %v354 = vadd.f32 %v224, %v353
        %v355 = vpop.f32.mrf.mxu0
        %v356 = vadd.f32 %v224, %v355
        %357 = vmatmul.bf16.gmra.mxu0 %v270
        %v358 = vpop.f32.mrf.mxu0
        %v359 = vadd.f32 %v224, %v358
        %v360 = vpop.f32.mrf.mxu0
        %v361 = vadd.f32 %v224, %v360
        %362 = vmatmul.bf16.gmra.mxu0 %v273
        %v363 = vpop.f32.mrf.mxu0
        %v364 = vadd.f32 %v224, %v363
        %v365 = vpop.f32.mrf.mxu0
        %v366 = vadd.f32 %v224, %v365
        %367 = vdwg.mxu0
        %v368 = vmul.f32 %v289, 0.01
        %v369 = vmul.f32 %v291, 0.01
        %v370 = vmul.f32 %v294, 0.01
        %v371 = vmul.f32 %v296, 0.01
        %v372 = vmul.f32 %v299, 0.01
        %v373 = vmul.f32 %v301, 0.01
        %v374 = vmul.f32 %v304, 0.01
        %v375 = vmul.f32 %v306, 0.01
        %v376 = vmul.f32 %v309, 0.01
        %v377 = vmul.f32 %v311, 0.01
        %v378 = vmul.f32 %v314, 0.01
        %v379 = vmul.f32 %v316, 0.01
        %v380 = vmul.f32 %v319, 0.01
        %v381 = vmul.f32 %v321, 0.01
        %v382 = vmul.f32 %v324, 0.01
        %v383 = vmul.f32 %v326, 0.01
        %v384 = vmul.f32 %v329, 0.01
        %v385 = vmul.f32 %v331, 0.01
        %v386 = vmul.f32 %v334, 0.01
        %v387 = vmul.f32 %v336, 0.01
        %v388 = vmul.f32 %v339, 0.01
        %v389 = vmul.f32 %v341, 0.01
        %v390 = vmul.f32 %v344, 0.01
        %v391 = vmul.f32 %v346, 0.01
        %v392 = vmul.f32 %v349, 0.01
        %v393 = vmul.f32 %v351, 0.01
        %v394 = vmul.f32 %v354, 0.01
        %v395 = vmul.f32 %v356, 0.01
        %v396 = vmul.f32 %v359, 0.01
        %v397 = vmul.f32 %v361, 0.01
        %v398 = vmul.f32 %v364, 0.01
        %v399 = vmul.f32 %v366, 0.01
        %v400 = vmax.f32 %v289, %v368
        %v401 = vmax.f32 %v291, %v369
        %v402 = vmax.f32 %v294, %v370
        %v403 = vmax.f32 %v296, %v371
        %v404 = vmax.f32 %v299, %v372
        %v405 = vmax.f32 %v301, %v373
        %v406 = vmax.f32 %v304, %v374
        %v407 = vmax.f32 %v306, %v375
        %v408 = vmax.f32 %v309, %v376
        %v409 = vmax.f32 %v311, %v377
        %v410 = vmax.f32 %v314, %v378
        %v411 = vmax.f32 %v316, %v379
        %v412 = vmax.f32 %v319, %v380
        %v413 = vmax.f32 %v321, %v381
        %v414 = vmax.f32 %v324, %v382
        %v415 = vmax.f32 %v326, %v383
        %v416 = vmax.f32 %v329, %v384
        %v417 = vmax.f32 %v331, %v385
        %v418 = vmax.f32 %v334, %v386
        %v419 = vmax.f32 %v336, %v387
        %v420 = vmax.f32 %v339, %v388
        %v421 = vmax.f32 %v341, %v389
        %v422 = vmax.f32 %v344, %v390
        %v423 = vmax.f32 %v346, %v391
        %v424 = vmax.f32 %v349, %v392
        %v425 = vmax.f32 %v351, %v393
        %v426 = vmax.f32 %v354, %v394
        %v427 = vmax.f32 %v356, %v395
        %v428 = vmax.f32 %v359, %v396
        %v429 = vmax.f32 %v361, %v397
        %v430 = vmax.f32 %v364, %v398
        %v431 = vmax.f32 %v366, %v399
        %432 = vst [vmem:[%s164] sm:$0xff] %v400
        %433 = vst [vmem:[%s164 + $0x8] sm:$0xff] %v401
        %434 = vst [vmem:[%s164 + $0x10] sm:$0xff] %v402
        %435 = vst [vmem:[%s164 + $0x18] sm:$0xff] %v403
        %436 = vst [vmem:[%s164 + $0x20] sm:$0xff] %v404
        %437 = vst [vmem:[%s164 + $0x28] sm:$0xff] %v405
        %438 = vst [vmem:[%s164 + $0x30] sm:$0xff] %v406
        %439 = vst [vmem:[%s164 + $0x38] sm:$0xff] %v407
        %440 = vst [vmem:[%s164 + $0x40] sm:$0xff] %v408
        %441 = vst [vmem:[%s164 + $0x48] sm:$0xff] %v409
        %442 = vst [vmem:[%s164 + $0x50] sm:$0xff] %v410
        %443 = vst [vmem:[%s164 + $0x58] sm:$0xff] %v411
        %444 = vst [vmem:[%s164 + $0x60] sm:$0xff] %v412
        %445 = vst [vmem:[%s164 + $0x68] sm:$0xff] %v413
        %446 = vst [vmem:[%s164 + $0x70] sm:$0xff] %v414
        %447 = vst [vmem:[%s164 + $0x78] sm:$0xff] %v415
        %448 = vst [vmem:[%s164 + $0x80] sm:$0xff] %v416
        %449 = vst [vmem:[%s164 + $0x88] sm:$0xff] %v417
        %450 = vst [vmem:[%s164 + $0x90] sm:$0xff] %v418
        %451 = vst [vmem:[%s164 + $0x98] sm:$0xff] %v419
        %452 = vst [vmem:[%s164 + $0xa0] sm:$0xff] %v420
        %453 = vst [vmem:[%s164 + $0xa8] sm:$0xff] %v421
        %454 = vst [vmem:[%s164 + $0xb0] sm:$0xff] %v422
        %455 = vst [vmem:[%s164 + $0xb8] sm:$0xff] %v423
        %456 = vst [vmem:[%s164 + $0xc0] sm:$0xff] %v424
        %457 = vst [vmem:[%s164 + $0xc8] sm:$0xff] %v425
        %458 = vst [vmem:[%s164 + $0xd0] sm:$0xff] %v426
        %459 = vst [vmem:[%s164 + $0xd8] sm:$0xff] %v427
        %460 = vst [vmem:[%s164 + $0xe0] sm:$0xff] %v428
        %461 = vst [vmem:[%s164 + $0xe8] sm:$0xff] %v429
        %462 = vst [vmem:[%s164 + $0xf0] sm:$0xff] %v430
        %463 = vst [vmem:[%s164 + $0xf8] sm:$0xff] %v431
        %s464 = sand.u32 %s93, 1
        %s465 = scalar_lea.sflag [#allocation3], %s464
        %s466 = sand.u32 %s93, 1
        %s467 = smul.addr %s466, 256
        %s468 = scalar_lea.vmem [#allocation2], %s467
        // Predicated region
        $region33: #{_lambda_.1} parent=31 // pred_check
          %p469 = pneg %p103
        $region34: #{_lambda_.1} parent=31 // pred_check_branch
          %471 = sbr.rel (%p469) target = $region36
        $region35: #{_lambda_.1} parent=31 // pred_region
          %s472 = smul.u32 32, %s17
          %474 = vsyncadd %s465, 0
          %s475 = smul.addr %s472, 8
          %s476 = scalar_lea.hbm %s3, %s475
          %s477 = sshll.u32 %s468, 4
          %s478 = int_to_ptr.vmem [resolvable:$true] %s477
          %s479 = sshll.u32 %s476, 4
          %s480 = int_to_ptr.hbm [resolvable:$true] %s479
          %485 = dma.vmem_to_hbm [thread:$0]  %s478, 4096, %s480, %s465, 128, 128, 8
        $region36: #{_lambda_.1} parent=31 // pred_fallthru
          _
      $region32: #{_lambda_.1} parent=5 // pred_fallthru
        _
      %p486 = scmp.le.s32.totalorder 2, %s12
      // Predicated region
      $region37: #{_lambda_.1} parent=5 // pred_check
        %p487 = pneg %p486
      $region38: #{_lambda_.1} parent=5 // pred_check_branch
        %489 = sbr.rel (%p487) target = $region40
      $region39: #{_lambda_.1} parent=5 // pred_region
        %s490 = ssub.s32 %s12, 2
        // Predicated region
        $region41: #{_lambda_.1} parent=39 // pred_check
          %p491 = pneg %p109
        $region42: #{_lambda_.1} parent=39 // pred_check_branch
          %493 = sbr.rel (%p491) target = $region44
        $region43: #{_lambda_.1} parent=39 // pred_region
          %s494 = sand.u32 %s94, 1
          %s495 = scalar_lea.sflag [#allocation3], %s494
          %s496 = sand.u32 %s94, 1
          %s497 = smul.addr %s496, 256
          %s498 = scalar_lea.vmem [#allocation2], %s497
          %500 = dma.done %s495, 4096
        $region44: #{_lambda_.1} parent=39 // pred_fallthru
          _
      $region40: #{_lambda_.1} parent=5 // pred_fallthru
        _
    $region6: #{_lambda_.1} parent=1 // loop_footer
      %s16 = sadd.s32 1, %s12
    $region7: #{_lambda_.1} parent=1 // loop_footer_branch
      %11 = sbr.rel target = $region3
    $region8: #{_lambda_.1} parent=1 // loop_exit
      _
    %501 = vsyncpa [#allocation3], 1
    %s502 = scalar_lea.sflag [#allocation3], 1
    %503 = vsyncpa %s502, 1

</llo_original>
